<compile_context>
chip_gen: v7x
topology: tpu7x:2x2x1
jax: 0.10.0
libtpu: 0.0.40
codegen_flags: <defaults>
</compile_context>

<pallas_src>
import jax
import jax.numpy as jnp
from jax.experimental import pallas as pl
from jax.experimental.pallas import tpu as pltpu

# ---------------------------------------------------------------------------
# Model geometry (input_size stands in for X_train.shape[1]).
# ---------------------------------------------------------------------------
INPUT_SIZE = 32
HIDDEN_SIZES = [256, 128, 64, 32]
OUTPUT_SIZE = 1
NUM_LAYERS = 5
BATCH = 8

# ---------------------------------------------------------------------------
# Packed-slab layout (bf16, lane width 256):
#   L1 weight (32,256)           -> rows [  0: 32), cols [  0:256)
#   L2 weight (256,128)          -> rows [ 32:288), cols [  0:128)
#   L5 weight (32,1)  pad(128,128)-> rows [ 32:160), cols [128:256)   (upper half of L2)
#   L3 weight (128,64) pad(128,128)-> rows [288:416), cols [  0:128)
#   L4 weight (64,32) pad(128,128)-> rows [288:416), cols [128:256)   (upper half of L3)
# All kernel slices start at lane offset 0 or 128 and at 16-aligned rows.
# Biases live in a separate (8,256) f32 array: row l = zero-padded bias of
# layer l (layer 1 uses all 256 lanes, layers 2-5 the first 128).
# ---------------------------------------------------------------------------
SLAB_COLS = 256
SLAB_ROWS = 416                      # 32 (L1) + 256 (L2) + 128 (L3/L4 shared rows)
OUT_PAD = 128                        # lane-dense padded output width

# (row_offset, col_offset) and padded (K, N) of each layer's weight block.
W_OFFSETS = ((0, 0), (32, 0), (288, 0), (288, 128), (32, 128))
W_BLOCK_SHAPES = ((32, 256), (256, 128), (128, 128), (128, 128), (128, 128))


# ---------------------------------------------------------------------------
# Kernel: whole 5-layer network in one invocation per batch tile.
# ---------------------------------------------------------------------------
def mlp_kernel(x_ref, w_ref, b_ref, o_ref):
    """Forward pass on one (TM, INPUT_SIZE) batch tile.

    w_ref : (SLAB_ROWS, SLAB_COLS) bf16 packed weight slab (layout above).
    b_ref : (8, SLAB_COLS) f32, row l = zero-padded bias of layer l.
    Matmuls run on the MXU in bf16 with f32 accumulation; bias+ReLU on the
    VPU in f32; sigmoid (logistic) on the EUP.
    """
    h = x_ref[...]                                   # (TM, 32) f32
    for l in range(NUM_LAYERS):
        r0, c0 = W_OFFSETS[l]
        kp, npad = W_BLOCK_SHAPES[l]
        w = w_ref[r0:r0 + kp, c0:c0 + npad]          # static, tile-aligned slice (bf16)
        b = b_ref[l:l + 1, 0:npad]                   # (1, npad) f32
        y = jnp.dot(h.astype(jnp.bfloat16), w,
                    preferred_element_type=jnp.float32) + b
        h = jnp.maximum(y, 0.0) if l < NUM_LAYERS - 1 else y

    # h is (TM, 128); only column 0 is the real logit, the rest are exact
    # zeros (padding).  Store a lane-dense block; the wrapper slices col 0.
    o_ref[...] = jax.nn.sigmoid(h)


# ---------------------------------------------------------------------------
# Host-side parameter prep.
# ---------------------------------------------------------------------------
def make_params(key, input_size, hidden_sizes, output_size):
    """Deterministic synthetic parameters (PyTorch-like uniform init)."""
    sizes = [input_size] + hidden_sizes + [output_size]
    params = []
    for i in range(len(sizes) - 1):
        fan_in, fan_out = sizes[i], sizes[i + 1]
        key, kw, kb = jax.random.split(key, 3)
        bound = 1.0 / jnp.sqrt(fan_in)
        w = jax.random.uniform(kw, (fan_in, fan_out), jnp.float32, -bound, bound)
        b = jax.random.uniform(kb, (fan_out,), jnp.float32, -bound, bound)
        params.append((w, b))
    return params


def pack_params(params):
    """Pack weights into one bf16 slab and biases into a small f32 array."""
    w_slab = jnp.zeros((SLAB_ROWS, SLAB_COLS), jnp.bfloat16)
    b_slab = jnp.zeros((8, SLAB_COLS), jnp.float32)
    for l, (w, b) in enumerate(params):
        k, n = w.shape
        r0, c0 = W_OFFSETS[l]
        kp, npad = W_BLOCK_SHAPES[l]
        assert k <= kp and n <= npad
        w_slab = w_slab.at[r0:r0 + k, c0:c0 + n].set(w.astype(jnp.bfloat16))
        b_slab = b_slab.at[l, :n].set(b.astype(jnp.float32))
    return w_slab, b_slab


# ---------------------------------------------------------------------------
# Wrapper.
# ---------------------------------------------------------------------------
def _round_up(x, m):
    return ((x + m - 1) // m) * m


def _choose_tm(batch, max_block_m=128):
    """Batch tile: >=2 grid steps once batch >= 16 so v7x's 2nd TC gets work."""
    if batch < 16:
        return _round_up(batch, 8)
    tm = _round_up((batch + 1) // 2, 8)
    return min(max_block_m, tm)


def neural_network_forward(x, w_slab, b_slab, *, max_block_m=128):
    """x: (batch, INPUT_SIZE) f32.  Returns (batch, OUTPUT_SIZE) f32."""
    batch = x.shape[0]
    tm = _choose_tm(batch, max_block_m)
    padded = _round_up(batch, tm)
    if padded != batch:
        x = jnp.pad(x, ((0, padded - batch), (0, 0)))
    grid = (padded // tm,)

    out_padded = pl.pallas_call(
        mlp_kernel,
        out_shape=jax.ShapeDtypeStruct((padded, OUT_PAD), jnp.float32),
        grid_spec=pltpu.PrefetchScalarGridSpec(
            num_scalar_prefetch=0,
            grid=grid,
            in_specs=[
                # Batch tile of the input.
                pl.BlockSpec((tm, INPUT_SIZE), lambda i: (i, 0)),
                # Whole weight slab; constant index_map -> fetched once,
                # VMEM-resident across grid steps.
                pl.BlockSpec((SLAB_ROWS, SLAB_COLS), lambda i: (0, 0)),
                # All biases (f32), also constant.
                pl.BlockSpec((8, SLAB_COLS), lambda i: (0, 0)),
            ],
            out_specs=pl.BlockSpec((tm, OUT_PAD), lambda i: (i, 0)),
        ),
        compiler_params=pltpu.CompilerParams(
            dimension_semantics=("parallel",),   # shard batch tiles across TCs (v7x)
        ),
    )(x, w_slab, b_slab)

    return out_padded[:batch, :OUTPUT_SIZE]


# ---------------------------------------------------------------------------
# References.
# ---------------------------------------------------------------------------
def reference_forward_f32(x, params):
    """Full-f32 model spec (what the PyTorch module computes)."""
    h = x
    for w, b in params[:-1]:
        h = jnp.maximum(h @ w + b.reshape(1, -1), 0.0)
    w, b = params[-1]
    return jax.nn.sigmoid(h @ w + b.reshape(1, -1))


def reference_forward_bf16(x, params):
    """Emulates the kernel's math: bf16 weights & MXU inputs, f32 accumulation."""
    h = x
    for i, (w, b) in enumerate(params):
        y = jnp.dot(h.astype(jnp.bfloat16), w.astype(jnp.bfloat16),
                    preferred_element_type=jnp.float32) + b.reshape(1, -1)
        h = jnp.maximum(y, 0.0) if i < len(params) - 1 else y
    return jax.nn.sigmoid(h)


if __name__ == "__main__":
    key = jax.random.PRNGKey(0)
    key, kx = jax.random.split(key)
    x = jax.random.normal(kx, (BATCH, INPUT_SIZE), jnp.float32)

    params = make_params(key, INPUT_SIZE, HIDDEN_SIZES, OUTPUT_SIZE)
    w_slab, b_slab = pack_params(params)

    out = neural_network_forward(x, w_slab, b_slab)
    out = jax.block_until_ready(out)
    assert out.shape == (BATCH, OUTPUT_SIZE)

    # Tight check vs. a reference that uses the same bf16-weight math.
    ref_bf16 = reference_forward_bf16(x, params)
    assert jnp.allclose(out, ref_bf16, atol=1e-4, rtol=1e-4), "mismatch vs bf16 reference"

    # Loose check vs. the full-f32 model spec (bf16 weights => ~1e-3 level error).
    ref_f32 = reference_forward_f32(x, params)
    assert jnp.allclose(out, ref_f32, atol=2e-2, rtol=0.0), "mismatch vs f32 reference"

    print("KERNEL_OK")
</pallas_src>

<mosaic_0001>
module attributes {stable_mosaic.version = 11 : i64} {
  func.func @mlp_kernel(%arg0: i32, %arg1: memref<8x32xf32, #tpu.memory_space<vmem>>, %arg2: memref<416x256xbf16, #tpu.memory_space<vmem>>, %arg3: memref<8x256xf32, #tpu.memory_space<vmem>>, %arg4: memref<8x128xf32, #tpu.memory_space<vmem>>) attributes {dimension_semantics = [#tpu.dimension_semantics<parallel>], iteration_bounds = array<i64: 1>, scalar_prefetch = 0 : i64, scratch_operands = 0 : i64, tpu.core_type = #tpu.core_type<tc>, window_params = [{transform_indices = @transform_0, window_bounds = array<i64: 8, 32>}, {pipeline_mode = #tpu.pipeline_mode<synchronous>, transform_indices = @transform_1, window_bounds = array<i64: 416, 256>}, {pipeline_mode = #tpu.pipeline_mode<synchronous>, transform_indices = @transform_2, window_bounds = array<i64: 8, 256>}, {transform_indices = @transform_3, window_bounds = array<i64: 8, 128>}]} {
    %c0 = arith.constant 0 : index
    %c0_0 = arith.constant 0 : index
    %0 = vector.load %arg1[%c0, %c0_0] : memref<8x32xf32, #tpu.memory_space<vmem>>, vector<8x32xf32>
    %c0_1 = arith.constant 0 : index
    %c0_2 = arith.constant 0 : index
    %1 = vector.load %arg2[%c0_1, %c0_2] : memref<416x256xbf16, #tpu.memory_space<vmem>>, vector<32x256xbf16>
    %c0_3 = arith.constant 0 : index
    %c0_4 = arith.constant 0 : index
    %2 = vector.load %arg3[%c0_3, %c0_4] : memref<8x256xf32, #tpu.memory_space<vmem>>, vector<1x256xf32>
    %3 = arith.truncf %0 : vector<8x32xf32> to vector<8x32xbf16>
    %cst = arith.constant dense<0.000000e+00> : vector<8x256xf32>
    %4 = tpu.matmul %3, %1, %cst {dimension_numbers = #tpu.dot_dimension_numbers<[1], [0], [0], [1], [0, 0, 1, 1], [], []>} : vector<8x32xbf16>, vector<32x256xbf16>, vector<8x256xf32> -> vector<8x256xf32>
    %5 = vector.broadcast %2 : vector<1x256xf32> to vector<8x256xf32>
    %6 = arith.addf %4, %5 : vector<8x256xf32>
    %cst_5 = arith.constant 0.000000e+00 : f32
    %7 = vector.broadcast %cst_5 : f32 to vector<8x256xf32>
    %8 = arith.maximumf %6, %7 : vector<8x256xf32>
    %c32 = arith.constant 32 : index
    %c0_6 = arith.constant 0 : index
    %9 = vector.load %arg2[%c32, %c0_6] : memref<416x256xbf16, #tpu.memory_space<vmem>>, vector<256x128xbf16>
    %c1 = arith.constant 1 : index
    %c0_7 = arith.constant 0 : index
    %10 = vector.load %arg3[%c1, %c0_7] : memref<8x256xf32, #tpu.memory_space<vmem>>, vector<1x128xf32>
    %11 = arith.truncf %8 : vector<8x256xf32> to vector<8x256xbf16>
    %cst_8 = arith.constant dense<0.000000e+00> : vector<8x128xf32>
    %12 = tpu.matmul %11, %9, %cst_8 {dimension_numbers = #tpu.dot_dimension_numbers<[1], [0], [0], [1], [0, 0, 1, 1], [], []>} : vector<8x256xbf16>, vector<256x128xbf16>, vector<8x128xf32> -> vector<8x128xf32>
    %13 = vector.broadcast %10 : vector<1x128xf32> to vector<8x128xf32>
    %14 = arith.addf %12, %13 : vector<8x128xf32>
    %cst_9 = arith.constant 0.000000e+00 : f32
    %15 = vector.broadcast %cst_9 : f32 to vector<8x128xf32>
    %16 = arith.maximumf %14, %15 : vector<8x128xf32>
    %c288 = arith.constant 288 : index
    %c0_10 = arith.constant 0 : index
    %17 = vector.load %arg2[%c288, %c0_10] : memref<416x256xbf16, #tpu.memory_space<vmem>>, vector<128x128xbf16>
    %c2 = arith.constant 2 : index
    %c0_11 = arith.constant 0 : index
    %18 = vector.load %arg3[%c2, %c0_11] : memref<8x256xf32, #tpu.memory_space<vmem>>, vector<1x128xf32>
    %19 = arith.truncf %16 : vector<8x128xf32> to vector<8x128xbf16>
    %cst_12 = arith.constant dense<0.000000e+00> : vector<8x128xf32>
    %20 = tpu.matmul %19, %17, %cst_12 {dimension_numbers = #tpu.dot_dimension_numbers<[1], [0], [0], [1], [0, 0, 1, 1], [], []>} : vector<8x128xbf16>, vector<128x128xbf16>, vector<8x128xf32> -> vector<8x128xf32>
    %21 = vector.broadcast %18 : vector<1x128xf32> to vector<8x128xf32>
    %22 = arith.addf %20, %21 : vector<8x128xf32>
    %cst_13 = arith.constant 0.000000e+00 : f32
    %23 = vector.broadcast %cst_13 : f32 to vector<8x128xf32>
    %24 = arith.maximumf %22, %23 : vector<8x128xf32>
    %c288_14 = arith.constant 288 : index
    %c128 = arith.constant 128 : index
    %25 = vector.load %arg2[%c288_14, %c128] : memref<416x256xbf16, #tpu.memory_space<vmem>>, vector<128x128xbf16>
    %c3 = arith.constant 3 : index
    %c0_15 = arith.constant 0 : index
    %26 = vector.load %arg3[%c3, %c0_15] : memref<8x256xf32, #tpu.memory_space<vmem>>, vector<1x128xf32>
    %27 = arith.truncf %24 : vector<8x128xf32> to vector<8x128xbf16>
    %cst_16 = arith.constant dense<0.000000e+00> : vector<8x128xf32>
    %28 = tpu.matmul %27, %25, %cst_16 {dimension_numbers = #tpu.dot_dimension_numbers<[1], [0], [0], [1], [0, 0, 1, 1], [], []>} : vector<8x128xbf16>, vector<128x128xbf16>, vector<8x128xf32> -> vector<8x128xf32>
    %29 = vector.broadcast %26 : vector<1x128xf32> to vector<8x128xf32>
    %30 = arith.addf %28, %29 : vector<8x128xf32>
    %cst_17 = arith.constant 0.000000e+00 : f32
    %31 = vector.broadcast %cst_17 : f32 to vector<8x128xf32>
    %32 = arith.maximumf %30, %31 : vector<8x128xf32>
    %c32_18 = arith.constant 32 : index
    %c128_19 = arith.constant 128 : index
    %33 = vector.load %arg2[%c32_18, %c128_19] : memref<416x256xbf16, #tpu.memory_space<vmem>>, vector<128x128xbf16>
    %c4 = arith.constant 4 : index
    %c0_20 = arith.constant 0 : index
    %34 = vector.load %arg3[%c4, %c0_20] : memref<8x256xf32, #tpu.memory_space<vmem>>, vector<1x128xf32>
    %35 = arith.truncf %32 : vector<8x128xf32> to vector<8x128xbf16>
    %cst_21 = arith.constant dense<0.000000e+00> : vector<8x128xf32>
    %36 = tpu.matmul %35, %33, %cst_21 {dimension_numbers = #tpu.dot_dimension_numbers<[1], [0], [0], [1], [0, 0, 1, 1], [], []>} : vector<8x128xbf16>, vector<128x128xbf16>, vector<8x128xf32> -> vector<8x128xf32>
    %37 = vector.broadcast %34 : vector<1x128xf32> to vector<8x128xf32>
    %38 = arith.addf %36, %37 : vector<8x128xf32>
    %39 = arith.negf %38 : vector<8x128xf32>
    %40 = math.exp %39 : vector<8x128xf32>
    %cst_22 = arith.constant 1.000000e+00 : f32
    %41 = vector.broadcast %cst_22 : f32 to vector<8x128xf32>
    %42 = arith.addf %41, %40 : vector<8x128xf32>
    %43 = arith.divf %41, %42 : vector<8x128xf32>
    %c0_23 = arith.constant 0 : index
    %c0_24 = arith.constant 0 : index
    %44 = vector.load %arg4[%c0_23, %c0_24] : memref<8x128xf32, #tpu.memory_space<vmem>>, vector<8x128xf32>
    tpu.vector_store %arg4[%c0_23, %c0_24], %43 {strides = array<i32>} : memref<8x128xf32, #tpu.memory_space<vmem>>, vector<8x128xf32>,
    return
  }
  func.func @transform_0(%arg0: i32) -> (i32, i32) {
    %c0_i32 = arith.constant 0 : i32
    %c0_i32_0 = arith.constant 0 : i32
    return %arg0, %c0_i32 : i32, i32
  }
  func.func @transform_1(%arg0: i32) -> (i32, i32) {
    %c0_i32 = arith.constant 0 : i32
    %c0_i32_0 = arith.constant 0 : i32
    %c0_i32_1 = arith.constant 0 : i32
    return %c0_i32, %c0_i32_0 : i32, i32
  }
  func.func @transform_2(%arg0: i32) -> (i32, i32) {
    %c0_i32 = arith.constant 0 : i32
    %c0_i32_0 = arith.constant 0 : i32
    %c0_i32_1 = arith.constant 0 : i32
    return %c0_i32, %c0_i32_0 : i32, i32
  }
  func.func @transform_3(%arg0: i32) -> (i32, i32) {
    %c0_i32 = arith.constant 0 : i32
    %c0_i32_0 = arith.constant 0 : i32
    return %arg0, %c0_i32 : i32, i32
  }
}

</mosaic_0001>

<llo_original>
// kernel: tpu_custom_call.1
$region0: #{tpu_custom_call.1}
  #allocation0 [shape = 'u32[]', space=smem, size = 0x4, offset = 0x4, fixed_abs, tag = 'smem constant byte address 0x4 - core index']
  #allocation1 [shape = 'u32[144,128]{1,0:T(1,128)}', space=vmem, size = 0x12000, scoped, tag = 'internal scratch']
  %s0 = inlined_call_operand.hbm [shape: f32[8,32], index: 0, kind: input, shape index: {}]
  %s1 = inlined_call_operand.hbm [shape: bf16[416,256], index: 1, kind: input, shape index: {}]
  %s2 = inlined_call_operand.hbm [shape: f32[8,256], index: 2, kind: input, shape index: {}]
  %s3 = inlined_call_operand.hbm [shape: f32[8,128], index: 3, kind: output, shape index: {}]
  %s4 = sld [smem:[#allocation0]]
  $region34: #{tpu_custom_call.1} parent=0
    _
  %s6 = ssub.s32 1, %s4
  %s7 = scalar_select 0, %s6, %s4
  $region1: #{tpu_custom_call.1} parent=0
    #allocation2 [shape = 'u8[4096]{0}', space=vmem, size = 0x1000, scoped, tag = 'input window, operand 0, single buffered']
    #allocation3 [shape = 's32[1]{0}', space=sflag, size = 0x4, scoped, tag = 'scoped memory for tpu_custom_call.1']
    #allocation4 [shape = 's32[1]{0}', space=sflag, size = 0x4, scoped, tag = 'scoped memory for tpu_custom_call.1']
    #allocation5 [shape = 'u8[212992]{0}', space=vmem, size = 0x34000, scoped, tag = 'input window, operand 1, single buffered']
    #allocation6 [shape = 's32[1]{0}', space=sflag, size = 0x4, scoped, tag = 'scoped memory for tpu_custom_call.1']
    #allocation7 [shape = 'u8[8192]{0}', space=vmem, size = 0x2000, scoped, tag = 'input window, operand 2, single buffered']
    #allocation8 [shape = 'u8[4096]{0}', space=vmem, size = 0x1000, scoped, tag = 'output window, operand 0, single buffered']
    %8 = vsyncpa [#allocation3], 0
    %9 = vsyncpa [#allocation6], 0
    %10 = vsyncpa [#allocation4], 0
    // Predicated region
    $region2: #{tpu_custom_call.1} parent=1 // pred_check
      _
    $region3: #{tpu_custom_call.1} parent=1 // pred_check_branch
      %12 = sbr.rel (0) target = $region5
    $region4: #{tpu_custom_call.1} parent=1 // pred_region
      %s14 = ssub.s32 128, 128
      %15 = vsyncadd [#allocation3], %s14
      %s17 = sshll.u32 [#allocation2], 4
      %s18 = int_to_ptr.vmem [resolvable:$true] %s17
      %20 = dma.hbm_to_vmem [thread:$0]  %s0, 128, %s18, [#allocation3]
    $region5: #{tpu_custom_call.1} parent=1 // pred_fallthru
      _
    // Predicated region
    $region6: #{tpu_custom_call.1} parent=1 // pred_check
      _
    $region7: #{tpu_custom_call.1} parent=1 // pred_check_branch
      %22 = sbr.rel (0) target = $region9
    $region8: #{tpu_custom_call.1} parent=1 // pred_region
      %s24 = ssub.s32 6656, 6656
      %25 = vsyncadd [#allocation6], %s24
      %s26 = sshll.u32 [#allocation5], 4
      %s27 = int_to_ptr.vmem [resolvable:$true] %s26
      %32 = dma.hbm_to_vmem [thread:$0]  %s1, 6656, %s27, [#allocation6], 128, 128, 8
    $region9: #{tpu_custom_call.1} parent=1 // pred_fallthru
      _
    // Predicated region
    $region10: #{tpu_custom_call.1} parent=1 // pred_check
      _
    $region11: #{tpu_custom_call.1} parent=1 // pred_check_branch
      %34 = sbr.rel (0) target = $region13
    $region12: #{tpu_custom_call.1} parent=1 // pred_region
      %s36 = ssub.s32 256, 256
      %37 = vsyncadd [#allocation6], %s36
      %s39 = sshll.u32 [#allocation7], 4
      %s40 = int_to_ptr.vmem [resolvable:$true] %s39
      %42 = dma.hbm_to_vmem [thread:$0]  %s2, 256, %s40, [#allocation6]
    $region13: #{tpu_custom_call.1} parent=1 // pred_fallthru
      _
    // Predicated region
    $region14: #{tpu_custom_call.1} parent=1 // pred_check
      _
    $region15: #{tpu_custom_call.1} parent=1 // pred_check_branch
      %44 = sbr.rel (0) target = $region17
    $region16: #{tpu_custom_call.1} parent=1 // pred_region
      %45 = dma.done [#allocation3], 128
    $region17: #{tpu_custom_call.1} parent=1 // pred_fallthru
      _
    // Predicated region
    $region18: #{tpu_custom_call.1} parent=1 // pred_check
      _
    $region19: #{tpu_custom_call.1} parent=1 // pred_check_branch
      %47 = sbr.rel (0) target = $region21
    $region20: #{tpu_custom_call.1} parent=1 // pred_region
      %48 = dma.done [#allocation6], 6656
    $region21: #{tpu_custom_call.1} parent=1 // pred_fallthru
      _
    // Predicated region
    $region22: #{tpu_custom_call.1} parent=1 // pred_check
      _
    $region23: #{tpu_custom_call.1} parent=1 // pred_check_branch
      %50 = sbr.rel (0) target = $region25
    $region24: #{tpu_custom_call.1} parent=1 // pred_region
      %51 = dma.done [#allocation6], 256
    $region25: #{tpu_custom_call.1} parent=1 // pred_fallthru
      _
    %v53 = vld [vmem:[#allocation2] sm:$0xff]
    %v54 = vld [vmem:[#allocation5] sm:$0xff]
    %v55 = vld [vmem:[#allocation5 + $0x8] sm:$0xff]
    %v56 = vld [vmem:[#allocation5 + $0x10] sm:$0xff]
    %v57 = vld [vmem:[#allocation5 + $0x18] sm:$0xff]
    %v58 = vld [vmem:[#allocation7] ss:$8 sm:$0x3]
    %v59 = vpack.c.bf16 %v53, %v53
    %v61 = vlaneseq
    %v62 = vshrl.u32 %v61, 7
    %v63 = vsub.s32 0, %v62
    %v64 = vrot.slane %v58, %v63
    %v65 = vlaneseq
    %v66 = vshrl.u32 %v65, 7
    %v67 = vsub.s32 1, %v66
    %v68 = vrot.slane %v58, %v67
    %v75 = vunpack.c.l.b16 %v54
    %v76 = vunpack.c.h.b16 %v54
    %v77 = vunpack.c.l.b16 %v55
    %v78 = vunpack.c.h.b16 %v55
    %v79 = vunpack.c.l.b16 %v56
    %v80 = vunpack.c.h.b16 %v56
    %v81 = vunpack.c.l.b16 %v57
    %v82 = vunpack.c.h.b16 %v57
    %v83 = vpack.c.b16 %v77, %v75
    %v84 = vpack.c.b16 %v78, %v76
    %v85 = vpack.c.b16 %v81, %v79
    %v86 = vpack.c.b16 %v82, %v80
    %vm91 = vcmask 261120
    %v93 = vsel %vm91, %v59, 0
    %95 = vmatprep.subr.bf16.mxu0 %v84
    %96 = vmatpush1.bf16.msra.mxu0 %v83
    %97 = vmatprep.subr.bf16.mxu0 %v86
    %98 = vmatpush1.bf16.msra.mxu0 %v85
    %99 = vmatprep.subr.bf16.mxu0 0
    %100 = vmatpush1.bf16.msra.mxu0 0
    %101 = vmatprep.subr.bf16.mxu0 0
    %102 = vmatpush1.bf16.msra.mxu0 0
    %103 = vmatprep.subr.bf16.mxu0 0
    %104 = vmatpush1.bf16.msra.mxu0 0
    %105 = vmatprep.subr.bf16.mxu0 0
    %106 = vmatpush1.bf16.msra.mxu0 0
    %107 = vmatprep.subr.bf16.mxu0 0
    %108 = vmatpush1.bf16.msra.mxu0 0
    %109 = vmatprep.subr.bf16.mxu0 0
    %110 = vmatpush1.bf16.msra.mxu0 0
    %111 = vmatprep.subr.bf16.mxu0 0
    %112 = vmatpush1.bf16.msra.mxu0 0
    %113 = vmatprep.subr.bf16.mxu0 0
    %114 = vmatpush1.bf16.msra.mxu0 0
    %115 = vmatprep.subr.bf16.mxu0 0
    %116 = vmatpush1.bf16.msra.mxu0 0
    %117 = vmatprep.subr.bf16.mxu0 0
    %118 = vmatpush1.bf16.msra.mxu0 0
    %119 = vmatprep.subr.bf16.mxu0 0
    %120 = vmatpush1.bf16.msra.mxu0 0
    %121 = vmatprep.subr.bf16.mxu0 0
    %122 = vmatpush1.bf16.msra.mxu0 0
    %123 = vmatprep.subr.bf16.mxu0 0
    %124 = vmatpush1.bf16.msra.mxu0 0
    %125 = vmatprep.subr.bf16.mxu0 0
    %126 = vmatpush1.bf16.msra.mxu0 0
    %127 = vmatprep.mubr.bf16.mxu0 0
    %128 = vmatmul.mubr.bf16.gmra.mrb[0].mxu0 %v93
    %v129 = vpop.f32.mrb[0].mxu0
    %v130 = vadd.f32 %v64, %v129
    %v131 = vpop.f32.mrb[0].mxu0
    %v132 = vadd.f32 %v68, %v131
    %v133 = vpop.f32.mrb[0].mxu0
    %v134 = vpop.f32.mrb[0].mxu0
    %135 = vdwg.mxu0
    %v136 = vmax.f32 %v130, 0.0
    %v137 = vmax.f32 %v132, 0.0
    %v138 = vld [vmem:[#allocation5 + $0x20] sm:$0xf]
    %v139 = vld [vmem:[#allocation5 + $0x28] sm:$0xf]
    %v140 = vld [vmem:[#allocation5 + $0x30] sm:$0xf]
    %v141 = vld [vmem:[#allocation5 + $0x38] sm:$0xf]
    %v142 = vld [vmem:[#allocation5 + $0x40] sm:$0xf]
    %v143 = vld [vmem:[#allocation5 + $0x48] sm:$0xf]
    %v144 = vld [vmem:[#allocation5 + $0x50] sm:$0xf]
    %v145 = vld [vmem:[#allocation5 + $0x58] sm:$0xf]
    %v146 = vld [vmem:[#allocation5 + $0x60] sm:$0xf]
    %v147 = vld [vmem:[#allocation5 + $0x68] sm:$0xf]
    %v148 = vld [vmem:[#allocation5 + $0x70] sm:$0xf]
    %v149 = vld [vmem:[#allocation5 + $0x78] sm:$0xf]
    %v150 = vld [vmem:[#allocation5 + $0x80] sm:$0xf]
    %v151 = vld [vmem:[#allocation5 + $0x88] sm:$0xf]
    %v152 = vld [vmem:[#allocation5 + $0x90] sm:$0xf]
    %v153 = vld [vmem:[#allocation5 + $0x98] sm:$0xf]
    %v154 = vld [vmem:[#allocation5 + $0xa0] sm:$0xf]
    %v155 = vld [vmem:[#allocation5 + $0xa8] sm:$0xf]
    %v156 = vld [vmem:[#allocation5 + $0xb0] sm:$0xf]
    %v157 = vld [vmem:[#allocation5 + $0xb8] sm:$0xf]
    %v158 = vld [vmem:[#allocation5 + $0xc0] sm:$0xf]
    %v159 = vld [vmem:[#allocation5 + $0xc8] sm:$0xf]
    %v160 = vld [vmem:[#allocation5 + $0xd0] sm:$0xf]
    %v161 = vld [vmem:[#allocation5 + $0xd8] sm:$0xf]
    %v162 = vld [vmem:[#allocation5 + $0xe0] sm:$0xf]
    %v163 = vld [vmem:[#allocation5 + $0xe8] sm:$0xf]
    %v164 = vld [vmem:[#allocation5 + $0xf0] sm:$0xf]
    %v165 = vld [vmem:[#allocation5 + $0xf8] sm:$0xf]
    %v166 = vld [vmem:[#allocation5 + $0x100] sm:$0xf]
    %v167 = vld [vmem:[#allocation5 + $0x108] sm:$0xf]
    %v168 = vld [vmem:[#allocation5 + $0x110] sm:$0xf]
    %v169 = vld [vmem:[#allocation5 + $0x118] sm:$0xf]
    %v170 = vld [vmem:[#allocation7 + $0x1] ss:$0 sm:$0xff]
    %v171 = vpack.c.bf16 %v136, %v136
    %v172 = vpack.c.bf16 %v137, %v137
    %v205 = vunpack.c.l.b16 %v138
    %v206 = vunpack.c.l.b16 %v139
    %v207 = vunpack.c.l.b16 %v140
    %v208 = vunpack.c.l.b16 %v141
    %v209 = vunpack.c.l.b16 %v142
    %v210 = vunpack.c.l.b16 %v143
    %v211 = vunpack.c.l.b16 %v144
    %v212 = vunpack.c.l.b16 %v145
    %v213 = vunpack.c.l.b16 %v146
    %v214 = vunpack.c.l.b16 %v147
    %v215 = vunpack.c.l.b16 %v148
    %v216 = vunpack.c.l.b16 %v149
    %v217 = vunpack.c.l.b16 %v150
    %v218 = vunpack.c.l.b16 %v151
    %v219 = vunpack.c.l.b16 %v152
    %v220 = vunpack.c.l.b16 %v153
    %v221 = vunpack.c.l.b16 %v154
    %v222 = vunpack.c.l.b16 %v155
    %v223 = vunpack.c.l.b16 %v156
    %v224 = vunpack.c.l.b16 %v157
    %v225 = vunpack.c.l.b16 %v158
    %v226 = vunpack.c.l.b16 %v159
    %v227 = vunpack.c.l.b16 %v160
    %v228 = vunpack.c.l.b16 %v161
    %v229 = vunpack.c.l.b16 %v162
    %v230 = vunpack.c.l.b16 %v163
    %v231 = vunpack.c.l.b16 %v164
    %v232 = vunpack.c.l.b16 %v165
    %v233 = vunpack.c.l.b16 %v166
    %v234 = vunpack.c.l.b16 %v167
    %v235 = vunpack.c.l.b16 %v168
    %v236 = vunpack.c.l.b16 %v169
    %v237 = vpack.c.b16 %v206, %v205
    %v238 = vpack.c.b16 %v208, %v207
    %v239 = vpack.c.b16 %v210, %v209
    %v240 = vpack.c.b16 %v212, %v211
    %v241 = vpack.c.b16 %v214, %v213
    %v242 = vpack.c.b16 %v216, %v215
    %v243 = vpack.c.b16 %v218, %v217
    %v244 = vpack.c.b16 %v220, %v219
    %v245 = vpack.c.b16 %v222, %v221
    %v246 = vpack.c.b16 %v224, %v223
    %v247 = vpack.c.b16 %v226, %v225
    %v248 = vpack.c.b16 %v228, %v227
    %v249 = vpack.c.b16 %v230, %v229
    %v250 = vpack.c.b16 %v232, %v231
    %v251 = vpack.c.b16 %v234, %v233
    %v252 = vpack.c.b16 %v236, %v235
    %269 = vmatprep.subr.bf16.mxu0 0
    %270 = vmatpush1.bf16.msra.mxu0 %v237
    %271 = vmatprep.subr.bf16.mxu0 0
    %272 = vmatpush1.bf16.msra.mxu0 %v238
    %273 = vmatprep.subr.bf16.mxu0 0
    %274 = vmatpush1.bf16.msra.mxu0 %v239
    %275 = vmatprep.subr.bf16.mxu0 0
    %276 = vmatpush1.bf16.msra.mxu0 %v240
    %277 = vmatprep.subr.bf16.mxu0 0
    %278 = vmatpush1.bf16.msra.mxu0 %v241
    %279 = vmatprep.subr.bf16.mxu0 0
    %280 = vmatpush1.bf16.msra.mxu0 %v242
    %281 = vmatprep.subr.bf16.mxu0 0
    %282 = vmatpush1.bf16.msra.mxu0 %v243
    %283 = vmatprep.subr.bf16.mxu0 0
    %284 = vmatpush1.bf16.msra.mxu0 %v244
    %285 = vmatprep.subr.bf16.mxu0 0
    %286 = vmatpush1.bf16.msra.mxu0 %v245
    %287 = vmatprep.subr.bf16.mxu0 0
    %288 = vmatpush1.bf16.msra.mxu0 %v246
    %289 = vmatprep.subr.bf16.mxu0 0
    %290 = vmatpush1.bf16.msra.mxu0 %v247
    %291 = vmatprep.subr.bf16.mxu0 0
    %292 = vmatpush1.bf16.msra.mxu0 %v248
    %293 = vmatprep.subr.bf16.mxu0 0
    %294 = vmatpush1.bf16.msra.mxu0 %v249
    %295 = vmatprep.subr.bf16.mxu0 0
    %296 = vmatpush1.bf16.msra.mxu0 %v250
    %297 = vmatprep.subr.bf16.mxu0 0
    %298 = vmatpush1.bf16.msra.mxu0 %v251
    %299 = vmatprep.subr.bf16.mxu0 0
    %300 = vmatpush1.bf16.msra.mxu0 %v252
    %301 = vmatprep.mubr.bf16.mxu0 %v172
    %302 = vmatmul.mubr.bf16.gmra.mrb[0].mxu0 %v171
    %v303 = vpop.f32.mrb[0].mxu0
    %v304 = vadd.f32 %v170, %v303
    %v305 = vpop.f32.mrb[0].mxu0
    %v306 = vpop.f32.mrb[0].mxu0
    %v307 = vpop.f32.mrb[0].mxu0
    %308 = vdwg.mxu0
    %v309 = vmax.f32 %v304, 0.0
    %v310 = vld [vmem:[#allocation5 + $0x120] sm:$0xf]
    %v311 = vld [vmem:[#allocation5 + $0x128] sm:$0xf]
    %v312 = vld [vmem:[#allocation5 + $0x130] sm:$0xf]
    %v313 = vld [vmem:[#allocation5 + $0x138] sm:$0xf]
    %v314 = vld [vmem:[#allocation5 + $0x140] sm:$0xf]
    %v315 = vld [vmem:[#allocation5 + $0x148] sm:$0xf]
    %v316 = vld [vmem:[#allocation5 + $0x150] sm:$0xf]
    %v317 = vld [vmem:[#allocation5 + $0x158] sm:$0xf]
    %v318 = vld [vmem:[#allocation5 + $0x160] sm:$0xf]
    %v319 = vld [vmem:[#allocation5 + $0x168] sm:$0xf]
    %v320 = vld [vmem:[#allocation5 + $0x170] sm:$0xf]
    %v321 = vld [vmem:[#allocation5 + $0x178] sm:$0xf]
    %v322 = vld [vmem:[#allocation5 + $0x180] sm:$0xf]
    %v323 = vld [vmem:[#allocation5 + $0x188] sm:$0xf]
    %v324 = vld [vmem:[#allocation5 + $0x190] sm:$0xf]
    %v325 = vld [vmem:[#allocation5 + $0x198] sm:$0xf]
    %v326 = vld [vmem:[#allocation7 + $0x2] ss:$0 sm:$0xff]
    %v327 = vpack.c.bf16 %v309, %v309
    %v344 = vunpack.c.l.b16 %v310
    %v345 = vunpack.c.l.b16 %v311
    %v346 = vunpack.c.l.b16 %v312
    %v347 = vunpack.c.l.b16 %v313
    %v348 = vunpack.c.l.b16 %v314
    %v349 = vunpack.c.l.b16 %v315
    %v350 = vunpack.c.l.b16 %v316
    %v351 = vunpack.c.l.b16 %v317
    %v352 = vunpack.c.l.b16 %v318
    %v353 = vunpack.c.l.b16 %v319
    %v354 = vunpack.c.l.b16 %v320
    %v355 = vunpack.c.l.b16 %v321
    %v356 = vunpack.c.l.b16 %v322
    %v357 = vunpack.c.l.b16 %v323
    %v358 = vunpack.c.l.b16 %v324
    %v359 = vunpack.c.l.b16 %v325
    %v360 = vpack.c.b16 %v345, %v344
    %v361 = vpack.c.b16 %v347, %v346
    %v362 = vpack.c.b16 %v349, %v348
    %v363 = vpack.c.b16 %v351, %v350
    %v364 = vpack.c.b16 %v353, %v352
    %v365 = vpack.c.b16 %v355, %v354
    %v366 = vpack.c.b16 %v357, %v356
    %v367 = vpack.c.b16 %v359, %v358
    %376 = vmatprep.subr.bf16.mxu0 0
    %377 = vmatpush1.bf16.msra.mxu0 %v360
    %378 = vmatprep.subr.bf16.mxu0 0
    %379 = vmatpush1.bf16.msra.mxu0 %v361
    %380 = vmatprep.subr.bf16.mxu0 0
    %381 = vmatpush1.bf16.msra.mxu0 %v362
    %382 = vmatprep.subr.bf16.mxu0 0
    %383 = vmatpush1.bf16.msra.mxu0 %v363
    %384 = vmatprep.subr.bf16.mxu0 0
    %385 = vmatpush1.bf16.msra.mxu0 %v364
    %386 = vmatprep.subr.bf16.mxu0 0
    %387 = vmatpush1.bf16.msra.mxu0 %v365
    %388 = vmatprep.subr.bf16.mxu0 0
    %389 = vmatpush1.bf16.msra.mxu0 %v366
    %390 = vmatprep.subr.bf16.mxu0 0
    %391 = vmatpush1.bf16.msra.mxu0 %v367
    %392 = vmatprep.subr.bf16.mxu0 0
    %393 = vmatpush1.bf16.msra.mxu0 0
    %394 = vmatprep.subr.bf16.mxu0 0
    %395 = vmatpush1.bf16.msra.mxu0 0
    %396 = vmatprep.subr.bf16.mxu0 0
    %397 = vmatpush1.bf16.msra.mxu0 0
    %398 = vmatprep.subr.bf16.mxu0 0
    %399 = vmatpush1.bf16.msra.mxu0 0
    %400 = vmatprep.subr.bf16.mxu0 0
    %401 = vmatpush1.bf16.msra.mxu0 0
    %402 = vmatprep.subr.bf16.mxu0 0
    %403 = vmatpush1.bf16.msra.mxu0 0
    %404 = vmatprep.subr.bf16.mxu0 0
    %405 = vmatpush1.bf16.msra.mxu0 0
    %406 = vmatprep.subr.bf16.mxu0 0
    %407 = vmatpush1.bf16.msra.mxu0 0
    %408 = vmatprep.mubr.bf16.mxu0 0
    %409 = vmatmul.mubr.bf16.gmra.mrb[0].mxu0 %v327
    %v410 = vpop.f32.mrb[0].mxu0
    %v411 = vadd.f32 %v326, %v410
    %v412 = vpop.f32.mrb[0].mxu0
    %v413 = vpop.f32.mrb[0].mxu0
    %v414 = vpop.f32.mrb[0].mxu0
    %415 = vdwg.mxu0
    %v416 = vmax.f32 %v411, 0.0
    %v417 = vld [vmem:[#allocation5 + $0x124] sm:$0xf]
    %v418 = vld [vmem:[#allocation5 + $0x12c] sm:$0xf]
    %v419 = vld [vmem:[#allocation5 + $0x134] sm:$0xf]
    %v420 = vld [vmem:[#allocation5 + $0x13c] sm:$0xf]
    %v421 = vld [vmem:[#allocation5 + $0x144] sm:$0xf]
    %v422 = vld [vmem:[#allocation5 + $0x14c] sm:$0xf]
    %v423 = vld [vmem:[#allocation5 + $0x154] sm:$0xf]
    %v424 = vld [vmem:[#allocation5 + $0x15c] sm:$0xf]
    %v425 = vld [vmem:[#allocation5 + $0x164] sm:$0xf]
    %v426 = vld [vmem:[#allocation5 + $0x16c] sm:$0xf]
    %v427 = vld [vmem:[#allocation5 + $0x174] sm:$0xf]
    %v428 = vld [vmem:[#allocation5 + $0x17c] sm:$0xf]
    %v429 = vld [vmem:[#allocation5 + $0x184] sm:$0xf]
    %v430 = vld [vmem:[#allocation5 + $0x18c] sm:$0xf]
    %v431 = vld [vmem:[#allocation5 + $0x194] sm:$0xf]
    %v432 = vld [vmem:[#allocation5 + $0x19c] sm:$0xf]
    %v433 = vld [vmem:[#allocation7 + $0x3] ss:$0 sm:$0xff]
    %v434 = vpack.c.bf16 %v416, %v416
    %v451 = vunpack.c.l.b16 %v417
    %v452 = vunpack.c.l.b16 %v418
    %v453 = vunpack.c.l.b16 %v419
    %v454 = vunpack.c.l.b16 %v420
    %v455 = vunpack.c.l.b16 %v421
    %v456 = vunpack.c.l.b16 %v422
    %v457 = vunpack.c.l.b16 %v423
    %v458 = vunpack.c.l.b16 %v424
    %v459 = vunpack.c.l.b16 %v425
    %v460 = vunpack.c.l.b16 %v426
    %v461 = vunpack.c.l.b16 %v427
    %v462 = vunpack.c.l.b16 %v428
    %v463 = vunpack.c.l.b16 %v429
    %v464 = vunpack.c.l.b16 %v430
    %v465 = vunpack.c.l.b16 %v431
    %v466 = vunpack.c.l.b16 %v432
    %v467 = vpack.c.b16 %v452, %v451
    %v468 = vpack.c.b16 %v454, %v453
    %v469 = vpack.c.b16 %v456, %v455
    %v470 = vpack.c.b16 %v458, %v457
    %v471 = vpack.c.b16 %v460, %v459
    %v472 = vpack.c.b16 %v462, %v461
    %v473 = vpack.c.b16 %v464, %v463
    %v474 = vpack.c.b16 %v466, %v465
    %483 = vmatprep.subr.bf16.mxu0 0
    %484 = vmatpush1.bf16.msra.mxu0 %v467
    %485 = vmatprep.subr.bf16.mxu0 0
    %486 = vmatpush1.bf16.msra.mxu0 %v468
    %487 = vmatprep.subr.bf16.mxu0 0
    %488 = vmatpush1.bf16.msra.mxu0 %v469
    %489 = vmatprep.subr.bf16.mxu0 0
    %490 = vmatpush1.bf16.msra.mxu0 %v470
    %491 = vmatprep.subr.bf16.mxu0 0
    %492 = vmatpush1.bf16.msra.mxu0 %v471
    %493 = vmatprep.subr.bf16.mxu0 0
    %494 = vmatpush1.bf16.msra.mxu0 %v472
    %495 = vmatprep.subr.bf16.mxu0 0
    %496 = vmatpush1.bf16.msra.mxu0 %v473
    %497 = vmatprep.subr.bf16.mxu0 0
    %498 = vmatpush1.bf16.msra.mxu0 %v474
    %499 = vmatprep.subr.bf16.mxu0 0
    %500 = vmatpush1.bf16.msra.mxu0 0
    %501 = vmatprep.subr.bf16.mxu0 0
    %502 = vmatpush1.bf16.msra.mxu0 0
    %503 = vmatprep.subr.bf16.mxu0 0
    %504 = vmatpush1.bf16.msra.mxu0 0
    %505 = vmatprep.subr.bf16.mxu0 0
    %506 = vmatpush1.bf16.msra.mxu0 0
    %507 = vmatprep.subr.bf16.mxu0 0
    %508 = vmatpush1.bf16.msra.mxu0 0
    %509 = vmatprep.subr.bf16.mxu0 0
    %510 = vmatpush1.bf16.msra.mxu0 0
    %511 = vmatprep.subr.bf16.mxu0 0
    %512 = vmatpush1.bf16.msra.mxu0 0
    %513 = vmatprep.subr.bf16.mxu0 0
    %514 = vmatpush1.bf16.msra.mxu0 0
    %515 = vmatprep.mubr.bf16.mxu0 0
    %516 = vmatmul.mubr.bf16.gmra.mrb[0].mxu0 %v434
    %v517 = vpop.f32.mrb[0].mxu0
    %v518 = vadd.f32 %v433, %v517
    %v519 = vpop.f32.mrb[0].mxu0
    %v520 = vpop.f32.mrb[0].mxu0
    %v521 = vpop.f32.mrb[0].mxu0
    %522 = vdwg.mxu0
    %v523 = vmax.f32 %v518, 0.0
    %v524 = vld [vmem:[#allocation5 + $0x24] sm:$0xf]
    %v525 = vld [vmem:[#allocation5 + $0x2c] sm:$0xf]
    %v526 = vld [vmem:[#allocation5 + $0x34] sm:$0xf]
    %v527 = vld [vmem:[#allocation5 + $0x3c] sm:$0xf]
    %v528 = vld [vmem:[#allocation5 + $0x44] sm:$0xf]
    %v529 = vld [vmem:[#allocation5 + $0x4c] sm:$0xf]
    %v530 = vld [vmem:[#allocation5 + $0x54] sm:$0xf]
    %v531 = vld [vmem:[#allocation5 + $0x5c] sm:$0xf]
    %v532 = vld [vmem:[#allocation5 + $0x64] sm:$0xf]
    %v533 = vld [vmem:[#allocation5 + $0x6c] sm:$0xf]
    %v534 = vld [vmem:[#allocation5 + $0x74] sm:$0xf]
    %v535 = vld [vmem:[#allocation5 + $0x7c] sm:$0xf]
    %v536 = vld [vmem:[#allocation5 + $0x84] sm:$0xf]
    %v537 = vld [vmem:[#allocation5 + $0x8c] sm:$0xf]
    %v538 = vld [vmem:[#allocation5 + $0x94] sm:$0xf]
    %v539 = vld [vmem:[#allocation5 + $0x9c] sm:$0xf]
    %v540 = vld [vmem:[#allocation7 + $0x4] ss:$0 sm:$0xff]
    %v541 = vpack.c.bf16 %v523, %v523
    %v558 = vunpack.c.l.b16 %v524
    %v559 = vunpack.c.l.b16 %v525
    %v560 = vunpack.c.l.b16 %v526
    %v561 = vunpack.c.l.b16 %v527
    %v562 = vunpack.c.l.b16 %v528
    %v563 = vunpack.c.l.b16 %v529
    %v564 = vunpack.c.l.b16 %v530
    %v565 = vunpack.c.l.b16 %v531
    %v566 = vunpack.c.l.b16 %v532
    %v567 = vunpack.c.l.b16 %v533
    %v568 = vunpack.c.l.b16 %v534
    %v569 = vunpack.c.l.b16 %v535
    %v570 = vunpack.c.l.b16 %v536
    %v571 = vunpack.c.l.b16 %v537
    %v572 = vunpack.c.l.b16 %v538
    %v573 = vunpack.c.l.b16 %v539
    %v574 = vpack.c.b16 %v559, %v558
    %v575 = vpack.c.b16 %v561, %v560
    %v576 = vpack.c.b16 %v563, %v562
    %v577 = vpack.c.b16 %v565, %v564
    %v578 = vpack.c.b16 %v567, %v566
    %v579 = vpack.c.b16 %v569, %v568
    %v580 = vpack.c.b16 %v571, %v570
    %v581 = vpack.c.b16 %v573, %v572
    %590 = vmatprep.subr.bf16.mxu0 0
    %591 = vmatpush1.bf16.msra.mxu0 %v574
    %592 = vmatprep.subr.bf16.mxu0 0
    %593 = vmatpush1.bf16.msra.mxu0 %v575
    %594 = vmatprep.subr.bf16.mxu0 0
    %595 = vmatpush1.bf16.msra.mxu0 %v576
    %596 = vmatprep.subr.bf16.mxu0 0
    %597 = vmatpush1.bf16.msra.mxu0 %v577
    %598 = vmatprep.subr.bf16.mxu0 0
    %599 = vmatpush1.bf16.msra.mxu0 %v578
    %600 = vmatprep.subr.bf16.mxu0 0
    %601 = vmatpush1.bf16.msra.mxu0 %v579
    %602 = vmatprep.subr.bf16.mxu0 0
    %603 = vmatpush1.bf16.msra.mxu0 %v580
    %604 = vmatprep.subr.bf16.mxu0 0
    %605 = vmatpush1.bf16.msra.mxu0 %v581
    %606 = vmatprep.subr.bf16.mxu0 0
    %607 = vmatpush1.bf16.msra.mxu0 0
    %608 = vmatprep.subr.bf16.mxu0 0
    %609 = vmatpush1.bf16.msra.mxu0 0
    %610 = vmatprep.subr.bf16.mxu0 0
    %611 = vmatpush1.bf16.msra.mxu0 0
    %612 = vmatprep.subr.bf16.mxu0 0
    %613 = vmatpush1.bf16.msra.mxu0 0
    %614 = vmatprep.subr.bf16.mxu0 0
    %615 = vmatpush1.bf16.msra.mxu0 0
    %616 = vmatprep.subr.bf16.mxu0 0
    %617 = vmatpush1.bf16.msra.mxu0 0
    %618 = vmatprep.subr.bf16.mxu0 0
    %619 = vmatpush1.bf16.msra.mxu0 0
    %620 = vmatprep.subr.bf16.mxu0 0
    %621 = vmatpush1.bf16.msra.mxu0 0
    %622 = vmatprep.mubr.bf16.mxu0 0
    %623 = vmatmul.mubr.bf16.gmra.mrb[0].mxu0 %v541
    %v624 = vpop.f32.mrb[0].mxu0
    %v625 = vadd.f32 %v540, %v624
    %v626 = vpop.f32.mrb[0].mxu0
    %v627 = vpop.f32.mrb[0].mxu0
    %v628 = vpop.f32.mrb[0].mxu0
    %629 = vdwg.mxu0
    %v630 = vxor.u32 %v625, 2147483648
    %v631 = vmul.f32 %v630, 1.442695
    %v632 = vpow.pop %v631
    %v633 = vadd.f32 %v632, 1.0
    %v634 = vrcp.pop %v633
    %v635 = vmul.f32 1.0, %v634
    %636 = vst [vmem:[#allocation8] sm:$0xff] %v635
    // Predicated region
    $region26: #{tpu_custom_call.1} parent=1 // pred_check
      _
    $region27: #{tpu_custom_call.1} parent=1 // pred_check_branch
      %638 = sbr.rel (0) target = $region29
    $region28: #{tpu_custom_call.1} parent=1 // pred_region
      %s640 = ssub.s32 128, 128
      %641 = vsyncadd [#allocation4], %s640
      %s643 = sshll.u32 [#allocation8], 4
      %s644 = int_to_ptr.vmem [resolvable:$true] %s643
      %646 = dma.vmem_to_hbm [thread:$0]  %s644, 128, %s3, [#allocation4]
    $region29: #{tpu_custom_call.1} parent=1 // pred_fallthru
      _
    // Predicated region
    $region30: #{tpu_custom_call.1} parent=1 // pred_check
      _
    $region31: #{tpu_custom_call.1} parent=1 // pred_check_branch
      %648 = sbr.rel (0) target = $region33
    $region32: #{tpu_custom_call.1} parent=1 // pred_region
      %649 = dma.done [#allocation4], 128
    $region33: #{tpu_custom_call.1} parent=1 // pred_fallthru
      _
    %650 = vsyncpa [#allocation3], 1
    %651 = vsyncpa [#allocation6], 1
    %652 = vsyncpa [#allocation4], 1

</llo_original>
